<compile_context>
chip_gen: v5e
topology: v5e:2x2
jax: 0.10.0
libtpu: 0.0.40
codegen_flags: <defaults>
</compile_context>

<pallas_src>
import jax
import jax.numpy as jnp
from jax.experimental import pallas as pl
from jax.experimental.pallas import tpu as pltpu


def _grad_kernel(x_ref, o_ref):
    # Block shape: (BC, H, W) — BC independent planes per grid step.
    x = x_ref[...].astype(jnp.float32)
    _, H, W = x.shape

    # Vertical kernel [[0,-1,0],[0,0,0],[0,1,0]] with padding=1:
    #   v[h, w] = x[h+1, w] - x[h-1, w]   (zeros outside the image)
    v = jnp.concatenate(
        [x[:, 1:2, :],                       # row 0      : x[1]   - 0
         x[:, 2:, :] - x[:, :-2, :],         # rows 1..H-2: x[h+1] - x[h-1]
         -x[:, H - 2:H - 1, :]],             # row H-1    : 0      - x[H-2]
        axis=1)

    # Horizontal kernel [[0,0,0],[-1,0,1],[0,0,0]] with padding=1:
    #   g[h, w] = x[h, w+1] - x[h, w-1]
    g = jnp.concatenate(
        [x[:, :, 1:2],
         x[:, :, 2:] - x[:, :, :-2],
         -x[:, :, W - 2:W - 1]],
        axis=2)

    o_ref[...] = jnp.sqrt(v * v + g * g + 1e-6).astype(o_ref.dtype)


def _pick_block_channels(nc, h, w, itemsize, target_bytes=2 << 20):
    """How many (H, W) planes to pack into one block, sized on padded VMEM layout."""
    pad_h = -(-h // 8) * 8          # sublane padding
    pad_w = -(-w // 128) * 128      # lane padding
    padded_plane_bytes = pad_h * pad_w * itemsize
    bc = max(1, min(nc, target_bytes // padded_plane_bytes))
    if nc >= 2:
        # keep at least 2 grid steps so both TensorCores get work on v7x
        bc = min(bc, -(-nc // 2))
    return int(bc)


def get_gradient_nopadding(x):
    """x: (N, C, H, W) -> (N, C, H, W) gradient magnitude (matches PyTorch module)."""
    N, C, H, W = x.shape
    assert H >= 3 and W >= 3, "spatial dims must be >= 3 for the 3x3 gradient"
    nc = N * C
    x_flat = x.reshape(nc, H, W)

    bc = _pick_block_channels(nc, H, W, x.dtype.itemsize)
    grid = -(-nc // bc)
    nc_pad = grid * bc
    if nc_pad != nc:
        # pad with zero planes so every grid step sees a full block (sliced off below)
        x_flat = jnp.pad(x_flat, ((0, nc_pad - nc), (0, 0), (0, 0)))

    out_flat = pl.pallas_call(
        _grad_kernel,
        out_shape=jax.ShapeDtypeStruct((nc_pad, H, W), x.dtype),
        grid_spec=pltpu.PrefetchScalarGridSpec(
            num_scalar_prefetch=0,
            grid=(grid,),
            in_specs=[pl.BlockSpec((bc, H, W), lambda i: (i, 0, 0))],
            out_specs=pl.BlockSpec((bc, H, W), lambda i: (i, 0, 0)),
        ),
        compiler_params=pltpu.CompilerParams(
            dimension_semantics=("parallel",),
            vmem_limit_bytes=48 * 1024 * 1024,
        ),
    )(x_flat)

    if nc_pad != nc:
        out_flat = out_flat[:nc]
    return out_flat.reshape(N, C, H, W)


def _reference(x):
    """Pure-JAX reference matching the PyTorch module semantics."""
    xp = jnp.pad(x, ((0, 0), (0, 0), (1, 1), (1, 1)))
    v = xp[:, :, 2:, 1:-1] - xp[:, :, :-2, 1:-1]   # x[h+1,w] - x[h-1,w]
    h = xp[:, :, 1:-1, 2:] - xp[:, :, 1:-1, :-2]   # x[h,w+1] - x[h,w-1]
    return jnp.sqrt(v * v + h * h + 1e-6)


if __name__ == "__main__":
    key = jax.random.PRNGKey(0)
    x = jax.random.normal(key, (2, 4, 16, 16), dtype=jnp.float32)

    out = jax.block_until_ready(get_gradient_nopadding(x))

    ref = _reference(x)
    assert out.shape == (2, 4, 16, 16)
    assert jnp.allclose(out, ref, atol=1e-5, rtol=1e-5), \
        float(jnp.max(jnp.abs(out - ref)))
    print("KERNEL_OK")
</pallas_src>

<mosaic_0001>
module attributes {stable_mosaic.version = 11 : i64} {
  func.func @_grad_kernel(%arg0: i32, %arg1: memref<4x16x16xf32, #tpu.memory_space<vmem>>, %arg2: memref<4x16x16xf32, #tpu.memory_space<vmem>>) attributes {dimension_semantics = [#tpu.dimension_semantics<parallel>], iteration_bounds = array<i64: 2>, scalar_prefetch = 0 : i64, scratch_operands = 0 : i64, tpu.core_type = #tpu.core_type<tc>, window_params = [{transform_indices = @transform_0, window_bounds = array<i64: 4, 16, 16>}, {transform_indices = @transform_1, window_bounds = array<i64: 4, 16, 16>}]} {
    %c0 = arith.constant 0 : index
    %c0_0 = arith.constant 0 : index
    %c0_1 = arith.constant 0 : index
    %0 = vector.load %arg1[%c0, %c0_0, %c0_1] : memref<4x16x16xf32, #tpu.memory_space<vmem>>, vector<4x16x16xf32>
    %1 = vector.extract_strided_slice %0 {offsets = [0, 1, 0], sizes = [4, 1, 16], strides = [1, 1, 1]} : vector<4x16x16xf32> to vector<4x1x16xf32>
    %2 = vector.extract_strided_slice %0 {offsets = [0, 2, 0], sizes = [4, 14, 16], strides = [1, 1, 1]} : vector<4x16x16xf32> to vector<4x14x16xf32>
    %3 = vector.extract_strided_slice %0 {offsets = [0, 0, 0], sizes = [4, 14, 16], strides = [1, 1, 1]} : vector<4x16x16xf32> to vector<4x14x16xf32>
    %4 = arith.subf %2, %3 : vector<4x14x16xf32>
    %5 = vector.extract_strided_slice %0 {offsets = [0, 14, 0], sizes = [4, 1, 16], strides = [1, 1, 1]} : vector<4x16x16xf32> to vector<4x1x16xf32>
    %cst = arith.constant 0.000000e+00 : f32
    %6 = vector.broadcast %cst : f32 to vector<4x1x16xf32>
    %7 = arith.subf %6, %5 : vector<4x1x16xf32>
    %8 = tpu.concatenate %1, %4, %7 in 1 : vector<4x1x16xf32>, vector<4x14x16xf32>, vector<4x1x16xf32> -> vector<4x16x16xf32>
    %9 = vector.extract_strided_slice %0 {offsets = [0, 0, 1], sizes = [4, 16, 1], strides = [1, 1, 1]} : vector<4x16x16xf32> to vector<4x16x1xf32>
    %10 = vector.extract_strided_slice %0 {offsets = [0, 0, 2], sizes = [4, 16, 14], strides = [1, 1, 1]} : vector<4x16x16xf32> to vector<4x16x14xf32>
    %11 = vector.extract_strided_slice %0 {offsets = [0, 0, 0], sizes = [4, 16, 14], strides = [1, 1, 1]} : vector<4x16x16xf32> to vector<4x16x14xf32>
    %12 = arith.subf %10, %11 : vector<4x16x14xf32>
    %13 = vector.extract_strided_slice %0 {offsets = [0, 0, 14], sizes = [4, 16, 1], strides = [1, 1, 1]} : vector<4x16x16xf32> to vector<4x16x1xf32>
    %cst_2 = arith.constant 0.000000e+00 : f32
    %14 = vector.broadcast %cst_2 : f32 to vector<4x16x1xf32>
    %15 = arith.subf %14, %13 : vector<4x16x1xf32>
    %16 = tpu.concatenate %9, %12, %15 in 2 : vector<4x16x1xf32>, vector<4x16x14xf32>, vector<4x16x1xf32> -> vector<4x16x16xf32>
    %17 = arith.mulf %8, %8 : vector<4x16x16xf32>
    %18 = arith.mulf %16, %16 : vector<4x16x16xf32>
    %19 = arith.addf %17, %18 : vector<4x16x16xf32>
    %cst_3 = arith.constant 9.99999997E-7 : f32
    %20 = vector.broadcast %cst_3 : f32 to vector<4x16x16xf32>
    %21 = arith.addf %19, %20 : vector<4x16x16xf32>
    %22 = math.sqrt %21 : vector<4x16x16xf32>
    %c0_4 = arith.constant 0 : index
    %c0_5 = arith.constant 0 : index
    %c0_6 = arith.constant 0 : index
    %23 = vector.load %arg2[%c0_4, %c0_5, %c0_6] : memref<4x16x16xf32, #tpu.memory_space<vmem>>, vector<4x16x16xf32>
    tpu.vector_store %arg2[%c0_4, %c0_5, %c0_6], %22 {strides = array<i32>} : memref<4x16x16xf32, #tpu.memory_space<vmem>>, vector<4x16x16xf32>,
    return
  }
  func.func @transform_0(%arg0: i32) -> (i32, i32, i32) {
    %c0_i32 = arith.constant 0 : i32
    %c0_i32_0 = arith.constant 0 : i32
    %c0_i32_1 = arith.constant 0 : i32
    return %arg0, %c0_i32, %c0_i32_0 : i32, i32, i32
  }
  func.func @transform_1(%arg0: i32) -> (i32, i32, i32) {
    %c0_i32 = arith.constant 0 : i32
    %c0_i32_0 = arith.constant 0 : i32
    %c0_i32_1 = arith.constant 0 : i32
    return %arg0, %c0_i32, %c0_i32_0 : i32, i32, i32
  }
}

</mosaic_0001>

<llo_original>
// kernel: tpu_custom_call.1
$region0: #{tpu_custom_call.1}
  #allocation0 [shape = 'u32[]', space=smem, size = 0x4, offset = 0x4, fixed_abs, tag = 'smem constant byte address 0x4 - core index']
  #allocation1 [shape = 'u32[72,128]{1,0:T(1,128)}', space=vmem, size = 0x9000, scoped, tag = 'internal scratch']
  %s0 = inlined_call_operand.hbm [shape: f32[8,16,16], index: 0, kind: input, shape index: {}]
  %s1 = inlined_call_operand.hbm [shape: f32[8,16,16], index: 1, kind: output, shape index: {}]
  %s2 = sld [smem:[#allocation0]]
  $region41: #{tpu_custom_call.1} parent=0
    _
  %s4 = ssub.s32 1, %s2
  %s5 = scalar_select 0, %s4, %s2
  $region1: #{tpu_custom_call.1} parent=0
    #allocation2 [shape = 'u8[65536]{0}', space=vmem, size = 0x10000, scoped, tag = 'input window, operand 0']
    #allocation3 [shape = 's32[2]{0}', space=sflag, size = 0x8, scoped, tag = 'scoped memory for tpu_custom_call.1']
    #allocation4 [shape = 's32[2]{0}', space=sflag, size = 0x8, scoped, tag = 'scoped memory for tpu_custom_call.1']
    #allocation5 [shape = 'u8[65536]{0}', space=vmem, size = 0x10000, scoped, tag = 'output window, operand 0']
    %6 = vsyncpa [#allocation3], 0
    %s7 = scalar_lea.sflag [#allocation3], 1
    %8 = vsyncpa %s7, 0
    %9 = vsyncpa [#allocation4], 0
    %s10 = scalar_lea.sflag [#allocation4], 1
    %11 = vsyncpa %s10, 0
    loop: start=0, step=1, limit=4
    $region2: #{tpu_custom_call.1} parent=1 // loop_pre_header
      _
    $region3: #{tpu_custom_call.1} parent=1 // loop_header
      %s13 = sphi 0, %s17
      %p14 = scmp.ge.s32.totalorder %s13, 4
      %s23 = sphi 0, %s25
      %s26 = sphi 0, %s23
      %s27 = sphi 0, %s26
      %s43 = sphi 0, %s27
      %s49 = sphi 0, %s51
      %s52 = sphi 0, %s49
      %s53 = sphi 0, %s52
      %s69 = sphi 0, %s53
    $region4: #{tpu_custom_call.1} parent=1 // loop_header_branch
      %16 = sbr.rel (%p14) target = $region8
    $region5: #{tpu_custom_call.1} parent=1 // loop_body
      %s18 = ssub.s32 %s13, 1
      %s19 = ssub.s32 %s13, 2
      %s20 = sadd.s32 %s13, 1
      %s21 = ssub.s32 %s13, %s20
      %p22 = scmp.eq.s32.totalorder %s21, 0
      %s24 = sadd.s32 %s23, 1
      %s25 = scalar_select %p22, %s23, %s24
      %p28 = pneg %p22
      %p29 = scmp.eq.s32.totalorder %s13, 1
      %p30 = por %p28, %p29
      %p31 = scmp.ne.s32.totalorder %s23, %s26
      %p32 = scmp.eq.s32.totalorder %s13, 0
      %p33 = por %p31, %p32
      %p34 = scmp.ne.s32.totalorder %s23, %s26
      %p35 = scmp.eq.s32.totalorder %s18, 1
      %p36 = por %p34, %p35
      %p37 = scmp.ne.s32.totalorder %s26, %s27
      %p38 = scmp.eq.s32.totalorder %s18, 0
      %p39 = por %p37, %p38
      %p40 = scmp.ne.s32.totalorder %s26, %s27
      %p41 = scmp.eq.s32.totalorder %s19, 1
      %p42 = por %p40, %p41
      %p44 = scmp.ne.s32.totalorder %s27, %s43
      %p45 = scmp.eq.s32.totalorder %s19, 0
      %p46 = por %p44, %p45
      %s47 = ssub.s32 %s13, %s20
      %p48 = scmp.eq.s32.totalorder %s47, 0
      %s50 = sadd.s32 %s49, 1
      %s51 = scalar_select %p48, %s49, %s50
      %p54 = pneg %p48
      %p55 = scmp.eq.s32.totalorder %s13, 1
      %p56 = por %p54, %p55
      %p57 = scmp.ne.s32.totalorder %s49, %s52
      %p58 = scmp.eq.s32.totalorder %s13, 0
      %p59 = por %p57, %p58
      %p60 = scmp.ne.s32.totalorder %s49, %s52
      %p61 = scmp.eq.s32.totalorder %s18, 1
      %p62 = por %p60, %p61
      %p63 = scmp.ne.s32.totalorder %s52, %s53
      %p64 = scmp.eq.s32.totalorder %s18, 0
      %p65 = por %p63, %p64
      %p66 = scmp.ne.s32.totalorder %s52, %s53
      %p67 = scmp.eq.s32.totalorder %s19, 1
      %p68 = por %p66, %p67
      %p70 = scmp.ne.s32.totalorder %s53, %s69
      %p71 = scmp.eq.s32.totalorder %s19, 0
      %p72 = por %p70, %p71
      %p73 = scmp.le.s32.totalorder 1, %s13
      %p74 = scmp.lt.s32.totalorder %s13, 3
      %p75 = pnand %p73, %p74
      %p76 = pneg %p75
      // Predicated region
      $region9: #{tpu_custom_call.1} parent=5 // pred_check
        _
      $region10: #{tpu_custom_call.1} parent=5 // pred_check_branch
        %78 = sbr.rel (%p75) target = $region12
      $region11: #{tpu_custom_call.1} parent=5 // pred_region
        %s79 = ssub.s32 %s13, 1
      $region12: #{tpu_custom_call.1} parent=5 // pred_fallthru
        _
      %p80 = scmp.lt.s32.totalorder %s13, 2
      // Predicated region
      $region13: #{tpu_custom_call.1} parent=5 // pred_check
        %p81 = pneg %p80
      $region14: #{tpu_custom_call.1} parent=5 // pred_check_branch
        %83 = sbr.rel (%p81) target = $region16
      $region15: #{tpu_custom_call.1} parent=5 // pred_region
        // Predicated region
        $region17: #{tpu_custom_call.1} parent=15 // pred_check
          %p84 = pneg %p33
        $region18: #{tpu_custom_call.1} parent=15 // pred_check_branch
          %86 = sbr.rel (%p84) target = $region20
        $region19: #{tpu_custom_call.1} parent=15 // pred_region
          %s87 = sand.u32 %s23, 1
          %s88 = scalar_lea.sflag [#allocation3], %s87
          %s89 = sand.u32 %s23, 1
          %s90 = smul.addr %s89, 64
          %s91 = scalar_lea.vmem [#allocation2], %s90
          %s92 = smul.u32 4, %s13
          %94 = vsyncadd %s88, 0
          %s95 = smul.addr %s92, 2
          %s96 = smul.addr %s95, 8
          %s97 = scalar_lea.hbm %s0, %s96
          %s98 = sshll.u32 %s97, 4
          %s99 = int_to_ptr.hbm [resolvable:$true] %s98
          %s100 = sshll.u32 %s91, 4
          %s101 = int_to_ptr.vmem [resolvable:$true] %s100
          %106 = dma.hbm_to_vmem [thread:$0]  %s99, 1024, %s101, %s88, 128, 128, 8
        $region20: #{tpu_custom_call.1} parent=15 // pred_fallthru
          _
      $region16: #{tpu_custom_call.1} parent=5 // pred_fallthru
        _
      %p107 = scmp.le.s32.totalorder 1, %s13
      %p108 = scmp.lt.s32.totalorder %s13, 3
      %p109 = pnand %p107, %p108
      %p110 = pneg %p109
      // Predicated region
      $region21: #{tpu_custom_call.1} parent=5 // pred_check
        _
      $region22: #{tpu_custom_call.1} parent=5 // pred_check_branch
        %112 = sbr.rel (%p109) target = $region24
      $region23: #{tpu_custom_call.1} parent=5 // pred_region
        %s113 = ssub.s32 %s13, 1
        %s114 = sand.u32 %s26, 1
        %s115 = scalar_lea.sflag [#allocation3], %s114
        %s116 = sand.u32 %s26, 1
        %s117 = smul.addr %s116, 64
        %s118 = scalar_lea.vmem [#allocation2], %s117
        // Predicated region
        $region25: #{tpu_custom_call.1} parent=23 // pred_check
          %p119 = pneg %p39
        $region26: #{tpu_custom_call.1} parent=23 // pred_check_branch
          %121 = sbr.rel (%p119) target = $region28
        $region27: #{tpu_custom_call.1} parent=23 // pred_region
          %123 = dma.done %s115, 1024
        $region28: #{tpu_custom_call.1} parent=23 // pred_fallthru
          _
        %s124 = sand.u32 %s26, 1
        %s125 = scalar_lea.sflag [#allocation3], %s124
        %s126 = sand.u32 %s26, 1
        %s127 = smul.addr %s126, 64
        %s128 = scalar_lea.vmem [#allocation2], %s127
        %p129 = pneg %p39
        %p130 = pneg %p36
        %p131 = pneg %p65
        %p132 = pneg %p62
        %s133 = sand.u32 %s52, 1
        %s134 = scalar_lea.sflag [#allocation4], %s133
        %s135 = sand.u32 %s52, 1
        %s136 = smul.addr %s135, 64
        %s137 = scalar_lea.vmem [#allocation5], %s136
        %s138 = smul.u32 4, %s18
        %s139 = smul.u32 4, %s18
        %v140 = vld [vmem:[%s118] sm:$0xff]
        %v141 = vld [vmem:[%s118 + $0x8] sm:$0xff]
        %v142 = vld [vmem:[%s118 + $0x10] sm:$0xff]
        %v143 = vld [vmem:[%s118 + $0x18] sm:$0xff]
        %v144 = vld [vmem:[%s118 + $0x20] sm:$0xff]
        %v145 = vld [vmem:[%s118 + $0x28] sm:$0xff]
        %v146 = vld [vmem:[%s118 + $0x30] sm:$0xff]
        %v147 = vld [vmem:[%s118 + $0x38] sm:$0xff]
        %vm156 = vcmask 1041408
        %v157 = vrot.slane %v140, 6
        %v158 = vrot.slane %v141, 6
        %v159 = vsel %vm156, %v157, %v158
        %v160 = vrot.slane %v142, 6
        %v161 = vrot.slane %v143, 6
        %v162 = vsel %vm156, %v160, %v161
        %v163 = vrot.slane %v144, 6
        %v164 = vrot.slane %v145, 6
        %v165 = vsel %vm156, %v163, %v164
        %v166 = vrot.slane %v146, 6
        %v167 = vrot.slane %v147, 6
        %v168 = vsel %vm156, %v166, %v167
        %v177 = vsub.f32 %v140, %v157
        %v178 = vsub.f32 %v141, %v159
        %v179 = vsub.f32 %v142, %v160
        %v180 = vsub.f32 %v143, %v162
        %v181 = vsub.f32 %v144, %v163
        %v182 = vsub.f32 %v145, %v165
        %v183 = vsub.f32 %v146, %v166
        %v184 = vsub.f32 %v147, %v168
        %v185 = vsub.f32 0.0, %v141
        %v186 = vsub.f32 0.0, %v143
        %v187 = vsub.f32 0.0, %v145
        %v188 = vsub.f32 0.0, %v147
        %v189 = vrot.slane %v140, 1
        %v190 = vrot.slane %v142, 1
        %v191 = vrot.slane %v144, 1
        %v192 = vrot.slane %v146, 1
        %vm205 = vcmask 1046528
        %v206 = vrot.slane %v177, 1
        %v207 = vrot.slane %v178, 1
        %v208 = vsel %vm205, %v206, %v207
        %v209 = vrot.slane %v179, 1
        %v210 = vrot.slane %v180, 1
        %v211 = vsel %vm205, %v209, %v210
        %v212 = vrot.slane %v181, 1
        %v213 = vrot.slane %v182, 1
        %v214 = vsel %vm205, %v212, %v213
        %v215 = vrot.slane %v183, 1
        %v216 = vrot.slane %v184, 1
        %v217 = vsel %vm205, %v215, %v216
        %v230 = vrot.slane %v185, 7
        %v231 = vrot.slane %v186, 7
        %v232 = vrot.slane %v187, 7
        %v233 = vrot.slane %v188, 7
        %vm238 = vcmask 1040384
        %v239 = vsel %vm238, %v189, %v208
        %v240 = vsel %vm238, %v190, %v211
        %v241 = vsel %vm238, %v191, %v214
        %v242 = vsel %vm238, %v192, %v217
        %v243 = vsel %vm205, %v207, %v230
        %v244 = vsel %vm205, %v210, %v231
        %v245 = vsel %vm205, %v213, %v232
        %v246 = vsel %vm205, %v216, %v233
        %247 = vrot.lane.b32.xlu0 %v140, 2
        %v248 = vpop.permute.xlu0 %247
        %249 = vrot.lane.b32.xlu0 %v141, 2
        %v250 = vpop.permute.xlu0 %249
        %251 = vrot.lane.b32.xlu0 %v142, 2
        %v252 = vpop.permute.xlu0 %251
        %253 = vrot.lane.b32.xlu0 %v143, 2
        %v254 = vpop.permute.xlu0 %253
        %255 = vrot.lane.b32.xlu0 %v144, 2
        %v256 = vpop.permute.xlu0 %255
        %257 = vrot.lane.b32.xlu0 %v145, 2
        %v258 = vpop.permute.xlu0 %257
        %259 = vrot.lane.b32.xlu0 %v146, 2
        %v260 = vpop.permute.xlu0 %259
        %261 = vrot.lane.b32.xlu0 %v147, 2
        %v262 = vpop.permute.xlu0 %261
        %v271 = vsub.f32 %v140, %v248
        %v272 = vsub.f32 %v141, %v250
        %v273 = vsub.f32 %v142, %v252
        %v274 = vsub.f32 %v143, %v254
        %v275 = vsub.f32 %v144, %v256
        %v276 = vsub.f32 %v145, %v258
        %v277 = vsub.f32 %v146, %v260
        %v278 = vsub.f32 %v147, %v262
        %v279 = vsub.f32 0.0, %v140
        %v280 = vsub.f32 0.0, %v142
        %v281 = vsub.f32 0.0, %v144
        %v282 = vsub.f32 0.0, %v146
        %283 = vrot.lane.b32.xlu0 %v140, 127
        %v284 = vpop.permute.xlu0 %283
        %285 = vrot.lane.b32.xlu0 %v141, 127
        %v286 = vpop.permute.xlu0 %285
        %287 = vrot.lane.b32.xlu0 %v142, 127
        %v288 = vpop.permute.xlu0 %287
        %289 = vrot.lane.b32.xlu0 %v143, 127
        %v290 = vpop.permute.xlu0 %289
        %291 = vrot.lane.b32.xlu0 %v144, 127
        %v292 = vpop.permute.xlu0 %291
        %293 = vrot.lane.b32.xlu0 %v145, 127
        %v294 = vpop.permute.xlu0 %293
        %295 = vrot.lane.b32.xlu0 %v146, 127
        %v296 = vpop.permute.xlu0 %295
        %297 = vrot.lane.b32.xlu0 %v147, 127
        %v298 = vpop.permute.xlu0 %297
        %315 = vrot.lane.b32.xlu0 %v271, 127
        %v316 = vpop.permute.xlu0 %315
        %317 = vrot.lane.b32.xlu0 %v272, 127
        %v318 = vpop.permute.xlu0 %317
        %319 = vrot.lane.b32.xlu0 %v273, 127
        %v320 = vpop.permute.xlu0 %319
        %321 = vrot.lane.b32.xlu0 %v274, 127
        %v322 = vpop.permute.xlu0 %321
        %323 = vrot.lane.b32.xlu0 %v275, 127
        %v324 = vpop.permute.xlu0 %323
        %325 = vrot.lane.b32.xlu0 %v276, 127
        %v326 = vpop.permute.xlu0 %325
        %327 = vrot.lane.b32.xlu0 %v277, 127
        %v328 = vpop.permute.xlu0 %327
        %329 = vrot.lane.b32.xlu0 %v278, 127
        %v330 = vpop.permute.xlu0 %329
        %343 = vrot.lane.b32.xlu0 %v279, 1
        %v344 = vpop.permute.xlu0 %343
        %345 = vrot.lane.b32.xlu0 %v185, 1
        %v346 = vpop.permute.xlu0 %345
        %347 = vrot.lane.b32.xlu0 %v280, 1
        %v348 = vpop.permute.xlu0 %347
        %349 = vrot.lane.b32.xlu0 %v186, 1
        %v350 = vpop.permute.xlu0 %349
        %351 = vrot.lane.b32.xlu0 %v281, 1
        %v352 = vpop.permute.xlu0 %351
        %353 = vrot.lane.b32.xlu0 %v187, 1
        %v354 = vpop.permute.xlu0 %353
        %355 = vrot.lane.b32.xlu0 %v282, 1
        %v356 = vpop.permute.xlu0 %355
        %357 = vrot.lane.b32.xlu0 %v188, 1
        %v358 = vpop.permute.xlu0 %357
        %vm367 = vcmask 7168
        %v368 = vsel %vm367, %v284, %v316
        %v369 = vsel %vm367, %v286, %v318
        %v370 = vsel %vm367, %v288, %v320
        %v371 = vsel %vm367, %v290, %v322
        %v372 = vsel %vm367, %v292, %v324
        %v373 = vsel %vm367, %v294, %v326
        %v374 = vsel %vm367, %v296, %v328
        %v375 = vsel %vm367, %v298, %v330
        %vm376 = vcmask 121856
        %v377 = vsel %vm376, %v368, %v344
        %v378 = vsel %vm376, %v369, %v346
        %v379 = vsel %vm376, %v370, %v348
        %v380 = vsel %vm376, %v371, %v350
        %v381 = vsel %vm376, %v372, %v352
        %v382 = vsel %vm376, %v373, %v354
        %v383 = vsel %vm376, %v374, %v356
        %v384 = vsel %vm376, %v375, %v358
        %v385 = vmul.f32 %v239, %v239
        %v386 = vmul.f32 %v243, %v243
        %v387 = vmul.f32 %v240, %v240
        %v388 = vmul.f32 %v244, %v244
        %v389 = vmul.f32 %v241, %v241
        %v390 = vmul.f32 %v245, %v245
        %v391 = vmul.f32 %v242, %v242
        %v392 = vmul.f32 %v246, %v246
        %v393 = vmul.f32 %v377, %v377
        %v394 = vmul.f32 %v378, %v378
        %v395 = vmul.f32 %v379, %v379
        %v396 = vmul.f32 %v380, %v380
        %v397 = vmul.f32 %v381, %v381
        %v398 = vmul.f32 %v382, %v382
        %v399 = vmul.f32 %v383, %v383
        %v400 = vmul.f32 %v384, %v384
        %v401 = vadd.f32 %v385, %v393
        %v402 = vadd.f32 %v386, %v394
        %v403 = vadd.f32 %v387, %v395
        %v404 = vadd.f32 %v388, %v396
        %v405 = vadd.f32 %v389, %v397
        %v406 = vadd.f32 %v390, %v398
        %v407 = vadd.f32 %v391, %v399
        %v408 = vadd.f32 %v392, %v400
        %v409 = vadd.f32 %v401, 1e-06
        %v410 = vadd.f32 %v402, 1e-06
        %v411 = vadd.f32 %v403, 1e-06
        %v412 = vadd.f32 %v404, 1e-06
        %v413 = vadd.f32 %v405, 1e-06
        %v414 = vadd.f32 %v406, 1e-06
        %v415 = vadd.f32 %v407, 1e-06
        %v416 = vadd.f32 %v408, 1e-06
        %v417 = vrsqrt.pop %v409
        %v418 = vmul.f32 %v417, %v409
        %v419 = vmul.f32 %v418, %v417
        %v420 = vmul.f32 0.5, %v419
        %v421 = vsub.f32 1.5, %v420
        %v422 = vmul.f32 %v417, %v421
        %v423 = vmul.f32 %v409, %v422
        %vm424 = vcmp.eq.f32.partialorder %v409, inf
        %v425 = vsel %vm424, %v409, %v423
        %vm426 = vcmp.eq.f32.partialorder %v409, 0.0
        %v427 = vand.u32 %v409, 2147483648
        %v428 = vsel %vm426, %v427, %v425
        %v429 = vrsqrt.pop %v410
        %v430 = vmul.f32 %v429, %v410
        %v431 = vmul.f32 %v430, %v429
        %v432 = vmul.f32 0.5, %v431
        %v433 = vsub.f32 1.5, %v432
        %v434 = vmul.f32 %v429, %v433
        %v435 = vmul.f32 %v410, %v434
        %vm436 = vcmp.eq.f32.partialorder %v410, inf
        %v437 = vsel %vm436, %v410, %v435
        %vm438 = vcmp.eq.f32.partialorder %v410, 0.0
        %v439 = vand.u32 %v410, 2147483648
        %v440 = vsel %vm438, %v439, %v437
        %v441 = vrsqrt.pop %v411
        %v442 = vmul.f32 %v441, %v411
        %v443 = vmul.f32 %v442, %v441
        %v444 = vmul.f32 0.5, %v443
        %v445 = vsub.f32 1.5, %v444
        %v446 = vmul.f32 %v441, %v445
        %v447 = vmul.f32 %v411, %v446
        %vm448 = vcmp.eq.f32.partialorder %v411, inf
        %v449 = vsel %vm448, %v411, %v447
        %vm450 = vcmp.eq.f32.partialorder %v411, 0.0
        %v451 = vand.u32 %v411, 2147483648
        %v452 = vsel %vm450, %v451, %v449
        %v453 = vrsqrt.pop %v412
        %v454 = vmul.f32 %v453, %v412
        %v455 = vmul.f32 %v454, %v453
        %v456 = vmul.f32 0.5, %v455
        %v457 = vsub.f32 1.5, %v456
        %v458 = vmul.f32 %v453, %v457
        %v459 = vmul.f32 %v412, %v458
        %vm460 = vcmp.eq.f32.partialorder %v412, inf
        %v461 = vsel %vm460, %v412, %v459
        %vm462 = vcmp.eq.f32.partialorder %v412, 0.0
        %v463 = vand.u32 %v412, 2147483648
        %v464 = vsel %vm462, %v463, %v461
        %v465 = vrsqrt.pop %v413
        %v466 = vmul.f32 %v465, %v413
        %v467 = vmul.f32 %v466, %v465
        %v468 = vmul.f32 0.5, %v467
        %v469 = vsub.f32 1.5, %v468
        %v470 = vmul.f32 %v465, %v469
        %v471 = vmul.f32 %v413, %v470
        %vm472 = vcmp.eq.f32.partialorder %v413, inf
        %v473 = vsel %vm472, %v413, %v471
        %vm474 = vcmp.eq.f32.partialorder %v413, 0.0
        %v475 = vand.u32 %v413, 2147483648
        %v476 = vsel %vm474, %v475, %v473
        %v477 = vrsqrt.pop %v414
        %v478 = vmul.f32 %v477, %v414
        %v479 = vmul.f32 %v478, %v477
        %v480 = vmul.f32 0.5, %v479
        %v481 = vsub.f32 1.5, %v480
        %v482 = vmul.f32 %v477, %v481
        %v483 = vmul.f32 %v414, %v482
        %vm484 = vcmp.eq.f32.partialorder %v414, inf
        %v485 = vsel %vm484, %v414, %v483
        %vm486 = vcmp.eq.f32.partialorder %v414, 0.0
        %v487 = vand.u32 %v414, 2147483648
        %v488 = vsel %vm486, %v487, %v485
        %v489 = vrsqrt.pop %v415
        %v490 = vmul.f32 %v489, %v415
        %v491 = vmul.f32 %v490, %v489
        %v492 = vmul.f32 0.5, %v491
        %v493 = vsub.f32 1.5, %v492
        %v494 = vmul.f32 %v489, %v493
        %v495 = vmul.f32 %v415, %v494
        %vm496 = vcmp.eq.f32.partialorder %v415, inf
        %v497 = vsel %vm496, %v415, %v495
        %vm498 = vcmp.eq.f32.partialorder %v415, 0.0
        %v499 = vand.u32 %v415, 2147483648
        %v500 = vsel %vm498, %v499, %v497
        %v501 = vrsqrt.pop %v416
        %v502 = vmul.f32 %v501, %v416
        %v503 = vmul.f32 %v502, %v501
        %v504 = vmul.f32 0.5, %v503
        %v505 = vsub.f32 1.5, %v504
        %v506 = vmul.f32 %v501, %v505
        %v507 = vmul.f32 %v416, %v506
        %vm508 = vcmp.eq.f32.partialorder %v416, inf
        %v509 = vsel %vm508, %v416, %v507
        %vm510 = vcmp.eq.f32.partialorder %v416, 0.0
        %v511 = vand.u32 %v416, 2147483648
        %v512 = vsel %vm510, %v511, %v509
        %vm513 = vcmask 130048
        %514 = vst.msk [vmem:[%s137] sm:$0xff] %vm513, %v428
        %515 = vst.msk [vmem:[%s137 + $0x8] sm:$0xff] %vm513, %v440
        %516 = vst.msk [vmem:[%s137 + $0x10] sm:$0xff] %vm513, %v452
        %517 = vst.msk [vmem:[%s137 + $0x18] sm:$0xff] %vm513, %v464
        %518 = vst.msk [vmem:[%s137 + $0x20] sm:$0xff] %vm513, %v476
        %519 = vst.msk [vmem:[%s137 + $0x28] sm:$0xff] %vm513, %v488
        %520 = vst.msk [vmem:[%s137 + $0x30] sm:$0xff] %vm513, %v500
        %521 = vst.msk [vmem:[%s137 + $0x38] sm:$0xff] %vm513, %v512
        %s522 = sand.u32 %s52, 1
        %s523 = scalar_lea.sflag [#allocation4], %s522
        %s524 = sand.u32 %s52, 1
        %s525 = smul.addr %s524, 64
        %s526 = scalar_lea.vmem [#allocation5], %s525
        // Predicated region
        $region29: #{tpu_custom_call.1} parent=23 // pred_check
          %p527 = pneg %p62
        $region30: #{tpu_custom_call.1} parent=23 // pred_check_branch
          %529 = sbr.rel (%p527) target = $region32
        $region31: #{tpu_custom_call.1} parent=23 // pred_region
          %s530 = smul.u32 4, %s18
          %532 = vsyncadd %s523, 0
          %s533 = smul.addr %s530, 2
          %s534 = smul.addr %s533, 8
          %s535 = scalar_lea.hbm %s1, %s534
          %s536 = sshll.u32 %s526, 4
          %s537 = int_to_ptr.vmem [resolvable:$true] %s536
          %s538 = sshll.u32 %s535, 4
          %s539 = int_to_ptr.hbm [resolvable:$true] %s538
          %544 = dma.vmem_to_hbm [thread:$0]  %s537, 1024, %s539, %s523, 128, 128, 8
        $region32: #{tpu_custom_call.1} parent=23 // pred_fallthru
          _
      $region24: #{tpu_custom_call.1} parent=5 // pred_fallthru
        _
      %p545 = scmp.le.s32.totalorder 2, %s13
      // Predicated region
      $region33: #{tpu_custom_call.1} parent=5 // pred_check
        %p546 = pneg %p545
      $region34: #{tpu_custom_call.1} parent=5 // pred_check_branch
        %548 = sbr.rel (%p546) target = $region36
      $region35: #{tpu_custom_call.1} parent=5 // pred_region
        %s549 = ssub.s32 %s13, 2
        // Predicated region
        $region37: #{tpu_custom_call.1} parent=35 // pred_check
          %p550 = pneg %p68
        $region38: #{tpu_custom_call.1} parent=35 // pred_check_branch
          %552 = sbr.rel (%p550) target = $region40
        $region39: #{tpu_custom_call.1} parent=35 // pred_region
          %s553 = sand.u32 %s53, 1
          %s554 = scalar_lea.sflag [#allocation4], %s553
          %s555 = sand.u32 %s53, 1
          %s556 = smul.addr %s555, 64
          %s557 = scalar_lea.vmem [#allocation5], %s556
          %559 = dma.done %s554, 1024
        $region40: #{tpu_custom_call.1} parent=35 // pred_fallthru
          _
      $region36: #{tpu_custom_call.1} parent=5 // pred_fallthru
        _
    $region6: #{tpu_custom_call.1} parent=1 // loop_footer
      %s17 = sadd.s32 1, %s13
    $region7: #{tpu_custom_call.1} parent=1 // loop_footer_branch
      %12 = sbr.rel target = $region3
    $region8: #{tpu_custom_call.1} parent=1 // loop_exit
      _
    %560 = vsyncpa [#allocation3], 1
    %s561 = scalar_lea.sflag [#allocation3], 1
    %562 = vsyncpa %s561, 1
    %563 = vsyncpa [#allocation4], 1
    %s564 = scalar_lea.sflag [#allocation4], 1
    %565 = vsyncpa %s564, 1

</llo_original>
